<compile_context>
chip_gen: v5e
topology: v5e:2x2
jax: 0.10.0
libtpu: 0.0.40
codegen_flags: <defaults>
</compile_context>

<pallas_src>
import jax
import jax.numpy as jnp
from jax.experimental import pallas as pl
from jax.experimental.pallas import tpu as pltpu


def _mlp_embedder_kernel(x_ref, w_in_ref, b_in_ref, w_out_ref, b_out_ref,
                         o_ref, h_ref):
    # Grid = (M tiles, N tiles); N (axis 1) is innermost and sequential.
    # First layer is computed once per M tile and cached in VMEM in the
    # second layer's MXU operand dtype (single cast, half-size scratch).
    @pl.when(pl.program_id(1) == 0)
    def _():
        h = jnp.dot(x_ref[...].astype(w_in_ref.dtype), w_in_ref[...],
                    preferred_element_type=jnp.float32)
        h = h + b_in_ref[...]                     # bias in f32
        h_ref[...] = (h * jax.nn.sigmoid(h)).astype(h_ref.dtype)   # SiLU, EUP

    # Second layer: reuse the cached h against this w_out column tile.
    out = jnp.dot(h_ref[...], w_out_ref[...],
                  preferred_element_type=jnp.float32)
    out = out + b_out_ref[...]
    o_ref[...] = out.astype(o_ref.dtype)


def _round_up(x, m):
    return (x + m - 1) // m * m


def _vmem_capacity_bytes():
    try:
        return int(pltpu.get_tpu_info().vmem_capacity_bytes)
    except Exception:
        return 64 * 1024 * 1024   # conservative default (v7x per-core VMEM)


def _pick_tiles(m, in_dim, hidden, x_isz, w_in_isz, w_out_isz, out_isz,
                tm=None, tn=None):
    cap = _vmem_capacity_bytes()
    vmem_limit = max(32 << 20, min(cap - (16 << 20), 100 << 20))
    budget = int(vmem_limit * 0.85)
    h_isz = w_out_isz                      # h scratch lives in w_out's dtype

    tm_auto = tm is None
    if tm_auto:
        tm_cap = 1024 if cap >= (96 << 20) else 512
        tm = min(tm_cap, _round_up(m, 8))

    def total_bytes(tm_, tn_):
        w_out_bufs = 1 if tn_ == hidden else 2       # resident when n_tiles==1
        return (in_dim * hidden * w_in_isz           # w_in (single-buffered)
                + 2 * tm_ * in_dim * x_isz           # x (double-buffered)
                + tm_ * hidden * h_isz               # h scratch
                + w_out_bufs * hidden * tn_ * w_out_isz
                + 2 * tm_ * tn_ * out_isz            # out (double-buffered)
                + 8 * hidden * 4)                    # biases (generous)

    if tn is None:
        if hidden % 128 != 0:
            # Last block dim must be a 128-multiple or the full dim.
            tn = hidden
        else:
            tn = 128
            for cand in (hidden, 2048, 1024, 512, 256, 128):
                if cand > hidden or hidden % cand != 0:
                    continue
                if total_bytes(tm, cand) <= budget:
                    tn = cand
                    break

    if tm_auto:
        # If even the chosen tn does not fit, shrink the (auto) M tile.
        while tm > 8 and total_bytes(tm, tn) > budget:
            tm = max(8, _round_up(tm // 2, 8))

    return tm, tn, vmem_limit


def mlp_embedder(x, w_in, b_in, w_out, b_out, *, tm=None, tn=None):
    """Fused MLPEmbedder forward: out_layer(SiLU(in_layer(x))).

    x: [..., in_dim]; w_in: [in_dim, hidden]; w_out: [hidden, hidden]
    (pre-transposed from PyTorch's [out, in]); biases: [hidden].
    Weights are consumed in the dtype they are passed in (pre-convert to
    bf16 once at setup for bf16 MXU operands); the accumulation, bias add
    and SiLU always run in float32.
    """
    out_dtype = x.dtype
    in_dim = x.shape[-1]
    hidden = w_in.shape[1]
    lead = x.shape[:-1]
    m = 1
    for d in lead:
        m *= d

    x2d = x.reshape(m, in_dim)
    b_in2d = b_in.reshape(1, hidden).astype(jnp.float32)
    b_out2d = b_out.reshape(1, hidden).astype(jnp.float32)

    tm, tn, vmem_limit = _pick_tiles(
        m, in_dim, hidden,
        jnp.dtype(x.dtype).itemsize, jnp.dtype(w_in.dtype).itemsize,
        jnp.dtype(w_out.dtype).itemsize, jnp.dtype(out_dtype).itemsize,
        tm=tm, tn=tn)

    m_pad = _round_up(m, tm)
    if m_pad != m:
        # Padded rows produce SiLU(b_in)-derived garbage; they are sliced off
        # below. Do not remove the slice.
        x2d = jnp.pad(x2d, ((0, m_pad - m), (0, 0)))

    grid = (m_pad // tm, hidden // tn)
    n_tiles = grid[1]
    h_dtype = w_out.dtype   # second-layer MXU operand dtype

    def build_call(use_single_buffer):
        # Constant-index inputs (w_in, b_in) never change block -> one buffer.
        const_kw = ({"pipeline_mode": pl.Buffered(buffer_count=1)}
                    if use_single_buffer else {})
        # Whole-w_out-resident variant: when n_tiles == 1 the w_out block
        # index is constant too, so it is fetched once and kept in VMEM.
        wout_kw = const_kw if (use_single_buffer and n_tiles == 1) else {}
        in_specs = [
            pl.BlockSpec((tm, in_dim), lambda i, j: (i, 0)),            # x
            pl.BlockSpec((in_dim, hidden), lambda i, j: (0, 0), **const_kw),
            pl.BlockSpec((1, hidden), lambda i, j: (0, 0), **const_kw),
            pl.BlockSpec((hidden, tn), lambda i, j: (0, j), **wout_kw),
            pl.BlockSpec((1, tn), lambda i, j: (0, j), **wout_kw),
        ]
        return pl.pallas_call(
            _mlp_embedder_kernel,
            out_shape=jax.ShapeDtypeStruct((m_pad, hidden), out_dtype),
            grid_spec=pltpu.PrefetchScalarGridSpec(
                num_scalar_prefetch=0,
                grid=grid,
                in_specs=in_specs,
                out_specs=pl.BlockSpec((tm, tn), lambda i, j: (i, j)),
                scratch_shapes=[pltpu.VMEM((tm, hidden), h_dtype)],  # cached h
            ),
            compiler_params=pltpu.CompilerParams(
                dimension_semantics=("parallel", "arbitrary"),
                vmem_limit_bytes=vmem_limit,
            ),
        )

    try:
        out = build_call(True)(x2d, w_in, b_in2d, w_out, b_out2d)
    except Exception:
        # Fallback if single-buffering via pl.Buffered(1) is not supported in
        # this JAX build: identical kernel, default double-buffering.
        out = build_call(False)(x2d, w_in, b_in2d, w_out, b_out2d)

    if m_pad != m:
        out = out[:m]
    return out.reshape(*lead, hidden)


def _reference(x, w_in, b_in, w_out, b_out):
    h = jnp.dot(x, w_in) + b_in
    h = h * jax.nn.sigmoid(h)
    return jnp.dot(h, w_out) + b_out


def _make_params(key, in_dim, hidden):
    # PyTorch-like init (uniform +/- 1/sqrt(fan_in)), stored pre-transposed
    # to (in, out) matmul layout.
    k_wi, k_bi, k_wo, k_bo = jax.random.split(key, 4)
    bound_in = 1.0 / (in_dim ** 0.5)
    w_in = jax.random.uniform(k_wi, (in_dim, hidden), jnp.float32,
                              -bound_in, bound_in)
    b_in = jax.random.uniform(k_bi, (hidden,), jnp.float32,
                              -bound_in, bound_in)
    bound_h = 1.0 / (hidden ** 0.5)
    w_out = jax.random.uniform(k_wo, (hidden, hidden), jnp.float32,
                               -bound_h, bound_h)
    b_out = jax.random.uniform(k_bo, (hidden,), jnp.float32,
                               -bound_h, bound_h)
    return w_in, b_in, w_out, b_out


if __name__ == "__main__":
    key = jax.random.PRNGKey(0)
    k1, k2, k3 = jax.random.split(key, 3)

    # --- Test 1: small shape, auto tiling, exact f32 path -------------------
    batch, seq, in_dim, hidden = 2, 8, 32, 64
    kx, kp = jax.random.split(k1)
    x = jax.random.normal(kx, (batch, seq, in_dim), dtype=jnp.float32)
    w_in, b_in, w_out, b_out = _make_params(kp, in_dim, hidden)

    y = mlp_embedder(x, w_in, b_in, w_out, b_out)
    jax.block_until_ready(y)
    y_ref = _reference(x, w_in, b_in, w_out, b_out)
    assert y.shape == (batch, seq, hidden), y.shape
    assert jnp.allclose(y, y_ref, atol=1e-5, rtol=1e-5), \
        float(jnp.max(jnp.abs(y - y_ref)))

    # --- Test 2: bf16 MXU operands (weights pre-converted ONCE at setup) ----
    w_in_bf16 = w_in.astype(jnp.bfloat16)      # one-time setup conversion,
    w_out_bf16 = w_out.astype(jnp.bfloat16)    # not a per-call wrapper cast
    y_bf16 = mlp_embedder(x, w_in_bf16, b_in, w_out_bf16, b_out)
    jax.block_until_ready(y_bf16)
    assert jnp.allclose(y_bf16, y_ref, atol=5e-2, rtol=5e-2), \
        float(jnp.max(jnp.abs(y_bf16 - y_ref)))

    # --- Test 3: exercises M/N tiling, h-cache reuse and M padding ----------
    batch2, seq2, in_dim2, hidden2 = 2, 10, 32, 256   # M = 20 -> padded to 24
    kx2, kp2 = jax.random.split(k2)
    x2 = jax.random.normal(kx2, (batch2, seq2, in_dim2), dtype=jnp.float32)
    w_in2, b_in2, w_out2, b_out2 = _make_params(kp2, in_dim2, hidden2)

    y2 = mlp_embedder(x2, w_in2, b_in2, w_out2, b_out2, tm=8, tn=128)
    jax.block_until_ready(y2)
    y2_ref = _reference(x2, w_in2, b_in2, w_out2, b_out2)
    assert y2.shape == (batch2, seq2, hidden2), y2.shape
    assert jnp.allclose(y2, y2_ref, atol=1e-5, rtol=1e-5), \
        float(jnp.max(jnp.abs(y2 - y2_ref)))

    print("KERNEL_OK")
</pallas_src>

<mosaic_0001>
module attributes {stable_mosaic.version = 11 : i64} {
  func.func @_mlp_embedder_kernel(%arg0: i32, %arg1: i32, %arg2: memref<16x32xf32, #tpu.memory_space<vmem>>, %arg3: memref<32x64xf32, #tpu.memory_space<vmem>>, %arg4: memref<1x64xf32, #tpu.memory_space<vmem>>, %arg5: memref<64x64xf32, #tpu.memory_space<vmem>>, %arg6: memref<1x64xf32, #tpu.memory_space<vmem>>, %arg7: memref<16x64xf32, #tpu.memory_space<vmem>>, %arg8: memref<16x64xf32, #tpu.memory_space<vmem>>) attributes {dimension_semantics = [#tpu.dimension_semantics<parallel>, #tpu.dimension_semantics<arbitrary>], iteration_bounds = array<i64: 1, 1>, scalar_prefetch = 0 : i64, scratch_operands = 1 : i64, tpu.core_type = #tpu.core_type<tc>, window_params = [{transform_indices = @transform_0, window_bounds = array<i64: 16, 32>}, {pipeline_mode = #tpu.pipeline_mode<synchronous>, transform_indices = @transform_1, window_bounds = array<i64: 32, 64>}, {pipeline_mode = #tpu.pipeline_mode<synchronous>, transform_indices = @transform_2, window_bounds = array<i64: 1, 64>}, {pipeline_mode = #tpu.pipeline_mode<synchronous>, transform_indices = @transform_3, window_bounds = array<i64: 64, 64>}, {pipeline_mode = #tpu.pipeline_mode<synchronous>, transform_indices = @transform_4, window_bounds = array<i64: 1, 64>}, {transform_indices = @transform_5, window_bounds = array<i64: 16, 64>}]} {
    %c0_i32 = arith.constant 0 : i32
    %0 = arith.cmpi eq, %arg1, %c0_i32 : i32
    %1 = arith.extui %0 : i1 to i32
    %c0_i32_0 = arith.constant 0 : i32
    %2 = arith.cmpi ne, %1, %c0_i32_0 : i32
    scf.if %2 {
      %c0_8 = arith.constant 0 : index
      %c0_9 = arith.constant 0 : index
      %10 = vector.load %arg2[%c0_8, %c0_9] : memref<16x32xf32, #tpu.memory_space<vmem>>, vector<16x32xf32>
      %c0_10 = arith.constant 0 : index
      %c0_11 = arith.constant 0 : index
      %11 = vector.load %arg3[%c0_10, %c0_11] : memref<32x64xf32, #tpu.memory_space<vmem>>, vector<32x64xf32>
      %cst_12 = arith.constant dense<0.000000e+00> : vector<16x64xf32>
      %12 = tpu.matmul %10, %11, %cst_12 {dimension_numbers = #tpu.dot_dimension_numbers<[1], [0], [0], [1], [0, 0, 1, 1], [], []>} : vector<16x32xf32>, vector<32x64xf32>, vector<16x64xf32> -> vector<16x64xf32>
      %c0_13 = arith.constant 0 : index
      %c0_14 = arith.constant 0 : index
      %13 = vector.load %arg4[%c0_13, %c0_14] : memref<1x64xf32, #tpu.memory_space<vmem>>, vector<1x64xf32>
      %14 = vector.broadcast %13 : vector<1x64xf32> to vector<16x64xf32>
      %15 = arith.addf %12, %14 : vector<16x64xf32>
      %16 = arith.negf %15 : vector<16x64xf32>
      %17 = math.exp %16 : vector<16x64xf32>
      %cst_15 = arith.constant 1.000000e+00 : f32
      %18 = vector.broadcast %cst_15 : f32 to vector<16x64xf32>
      %19 = arith.addf %18, %17 : vector<16x64xf32>
      %20 = arith.divf %18, %19 : vector<16x64xf32>
      %21 = arith.mulf %15, %20 : vector<16x64xf32>
      %c0_16 = arith.constant 0 : index
      %c0_17 = arith.constant 0 : index
      %22 = vector.load %arg8[%c0_16, %c0_17] : memref<16x64xf32, #tpu.memory_space<vmem>>, vector<16x64xf32>
      tpu.vector_store %arg8[%c0_16, %c0_17], %21 {strides = array<i32>} : memref<16x64xf32, #tpu.memory_space<vmem>>, vector<16x64xf32>,
    } else {
    }
    %c0 = arith.constant 0 : index
    %c0_1 = arith.constant 0 : index
    %3 = vector.load %arg8[%c0, %c0_1] : memref<16x64xf32, #tpu.memory_space<vmem>>, vector<16x64xf32>
    %c0_2 = arith.constant 0 : index
    %c0_3 = arith.constant 0 : index
    %4 = vector.load %arg5[%c0_2, %c0_3] : memref<64x64xf32, #tpu.memory_space<vmem>>, vector<64x64xf32>
    %cst = arith.constant dense<0.000000e+00> : vector<16x64xf32>
    %5 = tpu.matmul %3, %4, %cst {dimension_numbers = #tpu.dot_dimension_numbers<[1], [0], [0], [1], [0, 0, 1, 1], [], []>} : vector<16x64xf32>, vector<64x64xf32>, vector<16x64xf32> -> vector<16x64xf32>
    %c0_4 = arith.constant 0 : index
    %c0_5 = arith.constant 0 : index
    %6 = vector.load %arg6[%c0_4, %c0_5] : memref<1x64xf32, #tpu.memory_space<vmem>>, vector<1x64xf32>
    %7 = vector.broadcast %6 : vector<1x64xf32> to vector<16x64xf32>
    %8 = arith.addf %5, %7 : vector<16x64xf32>
    %c0_6 = arith.constant 0 : index
    %c0_7 = arith.constant 0 : index
    %9 = vector.load %arg7[%c0_6, %c0_7] : memref<16x64xf32, #tpu.memory_space<vmem>>, vector<16x64xf32>
    tpu.vector_store %arg7[%c0_6, %c0_7], %8 {strides = array<i32>} : memref<16x64xf32, #tpu.memory_space<vmem>>, vector<16x64xf32>,
    return
  }
  func.func @transform_0(%arg0: i32, %arg1: i32) -> (i32, i32) {
    %c0_i32 = arith.constant 0 : i32
    %c0_i32_0 = arith.constant 0 : i32
    return %arg0, %c0_i32 : i32, i32
  }
  func.func @transform_1(%arg0: i32, %arg1: i32) -> (i32, i32) {
    %c0_i32 = arith.constant 0 : i32
    %c0_i32_0 = arith.constant 0 : i32
    %c0_i32_1 = arith.constant 0 : i32
    return %c0_i32, %c0_i32_0 : i32, i32
  }
  func.func @transform_2(%arg0: i32, %arg1: i32) -> (i32, i32) {
    %c0_i32 = arith.constant 0 : i32
    %c0_i32_0 = arith.constant 0 : i32
    %c0_i32_1 = arith.constant 0 : i32
    return %c0_i32, %c0_i32_0 : i32, i32
  }
  func.func @transform_3(%arg0: i32, %arg1: i32) -> (i32, i32) {
    %c0_i32 = arith.constant 0 : i32
    %c0_i32_0 = arith.constant 0 : i32
    return %c0_i32, %arg1 : i32, i32
  }
  func.func @transform_4(%arg0: i32, %arg1: i32) -> (i32, i32) {
    %c0_i32 = arith.constant 0 : i32
    %c0_i32_0 = arith.constant 0 : i32
    return %c0_i32, %arg1 : i32, i32
  }
  func.func @transform_5(%arg0: i32, %arg1: i32) -> (i32, i32) {
    %c0_i32 = arith.constant 0 : i32
    return %arg0, %arg1 : i32, i32
  }
}

module attributes {stable_mosaic.version = 11 : i64} {
  func.func @_mlp_embedder_kernel(%arg0: i32, %arg1: i32, %arg2: memref<16x32xf32, #tpu.memory_space<vmem>>, %arg3: memref<32x64xf32, #tpu.memory_space<vmem>>, %arg4: memref<1x64xf32, #tpu.memory_space<vmem>>, %arg5: memref<64x64xf32, #tpu.memory_space<vmem>>, %arg6: memref<1x64xf32, #tpu.memory_space<vmem>>, %arg7: memref<16x64xf32, #tpu.memory_space<vmem>>, %arg8: memref<16x64xf32, #tpu.memory_space<vmem>>) attributes {dimension_semantics = [#tpu.dimension_semantics<parallel>, #tpu.dimension_semantics<arbitrary>], iteration_bounds = array<i64: 1, 1>, scalar_prefetch = 0 : i64, scratch_operands = 1 : i64, tpu.core_type = #tpu.core_type<tc>, window_params = [{transform_indices = @transform_0, window_bounds = array<i64: 16, 32>}, {pipeline_mode = #tpu.pipeline_mode<synchronous>, transform_indices = @transform_1, window_bounds = array<i64: 32, 64>}, {pipeline_mode = #tpu.pipeline_mode<synchronous>, transform_indices = @transform_2, window_bounds = array<i64: 1, 64>}, {transform_indices = @transform_3, window_bounds = array<i64: 64, 64>}, {transform_indices = @transform_4, window_bounds = array<i64: 1, 64>}, {transform_indices = @transform_5, window_bounds = array<i64: 16, 64>}]} {
    %c0_i32 = arith.constant 0 : i32
    %0 = arith.cmpi eq, %arg1, %c0_i32 : i32
    %1 = arith.extui %0 : i1 to i32
    %c0_i32_0 = arith.constant 0 : i32
    %2 = arith.cmpi ne, %1, %c0_i32_0 : i32
    scf.if %2 {
      %c0_8 = arith.constant 0 : index
      %c0_9 = arith.constant 0 : index
      %10 = vector.load %arg2[%c0_8, %c0_9] : memref<16x32xf32, #tpu.memory_space<vmem>>, vector<16x32xf32>
      %c0_10 = arith.constant 0 : index
      %c0_11 = arith.constant 0 : index
      %11 = vector.load %arg3[%c0_10, %c0_11] : memref<32x64xf32, #tpu.memory_space<vmem>>, vector<32x64xf32>
      %cst_12 = arith.constant dense<0.000000e+00> : vector<16x64xf32>
      %12 = tpu.matmul %10, %11, %cst_12 {dimension_numbers = #tpu.dot_dimension_numbers<[1], [0], [0], [1], [0, 0, 1, 1], [], []>} : vector<16x32xf32>, vector<32x64xf32>, vector<16x64xf32> -> vector<16x64xf32>
      %c0_13 = arith.constant 0 : index
      %c0_14 = arith.constant 0 : index
      %13 = vector.load %arg4[%c0_13, %c0_14] : memref<1x64xf32, #tpu.memory_space<vmem>>, vector<1x64xf32>
      %14 = vector.broadcast %13 : vector<1x64xf32> to vector<16x64xf32>
      %15 = arith.addf %12, %14 : vector<16x64xf32>
      %16 = arith.negf %15 : vector<16x64xf32>
      %17 = math.exp %16 : vector<16x64xf32>
      %cst_15 = arith.constant 1.000000e+00 : f32
      %18 = vector.broadcast %cst_15 : f32 to vector<16x64xf32>
      %19 = arith.addf %18, %17 : vector<16x64xf32>
      %20 = arith.divf %18, %19 : vector<16x64xf32>
      %21 = arith.mulf %15, %20 : vector<16x64xf32>
      %c0_16 = arith.constant 0 : index
      %c0_17 = arith.constant 0 : index
      %22 = vector.load %arg8[%c0_16, %c0_17] : memref<16x64xf32, #tpu.memory_space<vmem>>, vector<16x64xf32>
      tpu.vector_store %arg8[%c0_16, %c0_17], %21 {strides = array<i32>} : memref<16x64xf32, #tpu.memory_space<vmem>>, vector<16x64xf32>,
    } else {
    }
    %c0 = arith.constant 0 : index
    %c0_1 = arith.constant 0 : index
    %3 = vector.load %arg8[%c0, %c0_1] : memref<16x64xf32, #tpu.memory_space<vmem>>, vector<16x64xf32>
    %c0_2 = arith.constant 0 : index
    %c0_3 = arith.constant 0 : index
    %4 = vector.load %arg5[%c0_2, %c0_3] : memref<64x64xf32, #tpu.memory_space<vmem>>, vector<64x64xf32>
    %cst = arith.constant dense<0.000000e+00> : vector<16x64xf32>
    %5 = tpu.matmul %3, %4, %cst {dimension_numbers = #tpu.dot_dimension_numbers<[1], [0], [0], [1], [0, 0, 1, 1], [], []>} : vector<16x64xf32>, vector<64x64xf32>, vector<16x64xf32> -> vector<16x64xf32>
    %c0_4 = arith.constant 0 : index
    %c0_5 = arith.constant 0 : index
    %6 = vector.load %arg6[%c0_4, %c0_5] : memref<1x64xf32, #tpu.memory_space<vmem>>, vector<1x64xf32>
    %7 = vector.broadcast %6 : vector<1x64xf32> to vector<16x64xf32>
    %8 = arith.addf %5, %7 : vector<16x64xf32>
    %c0_6 = arith.constant 0 : index
    %c0_7 = arith.constant 0 : index
    %9 = vector.load %arg7[%c0_6, %c0_7] : memref<16x64xf32, #tpu.memory_space<vmem>>, vector<16x64xf32>
    tpu.vector_store %arg7[%c0_6, %c0_7], %8 {strides = array<i32>} : memref<16x64xf32, #tpu.memory_space<vmem>>, vector<16x64xf32>,
    return
  }
  func.func @transform_0(%arg0: i32, %arg1: i32) -> (i32, i32) {
    %c0_i32 = arith.constant 0 : i32
    %c0_i32_0 = arith.constant 0 : i32
    return %arg0, %c0_i32 : i32, i32
  }
  func.func @transform_1(%arg0: i32, %arg1: i32) -> (i32, i32) {
    %c0_i32 = arith.constant 0 : i32
    %c0_i32_0 = arith.constant 0 : i32
    %c0_i32_1 = arith.constant 0 : i32
    return %c0_i32, %c0_i32_0 : i32, i32
  }
  func.func @transform_2(%arg0: i32, %arg1: i32) -> (i32, i32) {
    %c0_i32 = arith.constant 0 : i32
    %c0_i32_0 = arith.constant 0 : i32
    %c0_i32_1 = arith.constant 0 : i32
    return %c0_i32, %c0_i32_0 : i32, i32
  }
  func.func @transform_3(%arg0: i32, %arg1: i32) -> (i32, i32) {
    %c0_i32 = arith.constant 0 : i32
    %c0_i32_0 = arith.constant 0 : i32
    return %c0_i32, %arg1 : i32, i32
  }
  func.func @transform_4(%arg0: i32, %arg1: i32) -> (i32, i32) {
    %c0_i32 = arith.constant 0 : i32
    %c0_i32_0 = arith.constant 0 : i32
    return %c0_i32, %arg1 : i32, i32
  }
  func.func @transform_5(%arg0: i32, %arg1: i32) -> (i32, i32) {
    %c0_i32 = arith.constant 0 : i32
    return %arg0, %arg1 : i32, i32
  }
}

</mosaic_0001>

<llo_original>
// kernel: tpu_custom_call.1
$region0: #{tpu_custom_call.1}
  #allocation0 [shape = 'u32[]', space=smem, size = 0x4, offset = 0x4, fixed_abs, tag = 'smem constant byte address 0x4 - core index']
  #allocation1 [shape = 'u32[72,128]{1,0:T(1,128)}', space=vmem, size = 0x9000, scoped, tag = 'internal scratch']
  #allocation2 [shape = 'f32[16,64]{1,0:T(8,128)}', space=vmem, size = 0x2000, scoped, tag = 'scratch operand']
  %s0 = inlined_call_operand.hbm [shape: f32[16,32], index: 0, kind: input, shape index: {}]
  %s1 = inlined_call_operand.hbm [shape: f32[32,64], index: 1, kind: input, shape index: {}]
  %s2 = inlined_call_operand.vmem [shape: f32[1,64], index: 2, kind: input, shape index: {}]
  %s3 = inlined_call_operand.hbm [shape: f32[64,64], index: 3, kind: input, shape index: {}]
  %s4 = inlined_call_operand.vmem [shape: f32[1,64], index: 4, kind: input, shape index: {}]
  %s5 = inlined_call_operand.hbm [shape: f32[16,64], index: 5, kind: output, shape index: {}]
  %s6 = sld [smem:[#allocation0]]
  $region46: #{tpu_custom_call.1} parent=0
    _
  %s8 = ssub.s32 1, %s6
  %s9 = scalar_select 0, %s8, %s6
  $region1: #{tpu_custom_call.1} parent=0
    #allocation3 [shape = 'u8[8192]{0}', space=vmem, size = 0x2000, scoped, tag = 'input window, operand 0, single buffered']
    #allocation4 [shape = 's32[1]{0}', space=sflag, size = 0x4, scoped, tag = 'scoped memory for tpu_custom_call.1']
    #allocation5 [shape = 's32[1]{0}', space=sflag, size = 0x4, scoped, tag = 'scoped memory for tpu_custom_call.1']
    #allocation6 [shape = 'u8[16384]{0}', space=vmem, size = 0x4000, scoped, tag = 'input window, operand 1, single buffered']
    #allocation7 [shape = 's32[1]{0}', space=sflag, size = 0x4, scoped, tag = 'scoped memory for tpu_custom_call.1']
    #allocation8 [shape = 'u8[32768]{0}', space=vmem, size = 0x8000, scoped, tag = 'input window, operand 3, single buffered']
    #allocation9 [shape = 'u8[8192]{0}', space=vmem, size = 0x2000, scoped, tag = 'output window, operand 0, single buffered']
    %10 = vsyncpa [#allocation4], 0
    %11 = vsyncpa [#allocation7], 0
    %12 = vsyncpa [#allocation5], 0
    // Predicated region
    $region2: #{tpu_custom_call.1} parent=1 // pred_check
      _
    $region3: #{tpu_custom_call.1} parent=1 // pred_check_branch
      %14 = sbr.rel (0) target = $region5
    $region4: #{tpu_custom_call.1} parent=1 // pred_region
      %16 = vsyncadd [#allocation4], 0
      %s17 = sshll.u32 %s0, 4
      %s18 = int_to_ptr.hbm [resolvable:$true] %s17
      %s19 = sshll.u32 [#allocation3], 4
      %s20 = int_to_ptr.vmem [resolvable:$true] %s19
      %25 = dma.hbm_to_vmem [thread:$0]  %s18, 256, %s20, [#allocation4], 128, 128, 8
    $region5: #{tpu_custom_call.1} parent=1 // pred_fallthru
      _
    // Predicated region
    $region6: #{tpu_custom_call.1} parent=1 // pred_check
      _
    $region7: #{tpu_custom_call.1} parent=1 // pred_check_branch
      %27 = sbr.rel (0) target = $region9
    $region8: #{tpu_custom_call.1} parent=1 // pred_region
      %29 = vsyncadd [#allocation7], 0
      %s30 = sshll.u32 %s1, 4
      %s31 = int_to_ptr.hbm [resolvable:$true] %s30
      %s32 = sshll.u32 [#allocation6], 4
      %s33 = int_to_ptr.vmem [resolvable:$true] %s32
      %38 = dma.hbm_to_vmem [thread:$0]  %s31, 512, %s33, [#allocation7], 128, 128, 8
    $region9: #{tpu_custom_call.1} parent=1 // pred_fallthru
      _
    // Predicated region
    $region10: #{tpu_custom_call.1} parent=1 // pred_check
      _
    $region11: #{tpu_custom_call.1} parent=1 // pred_check_branch
      %40 = sbr.rel (0) target = $region13
    $region12: #{tpu_custom_call.1} parent=1 // pred_region
      _
    $region13: #{tpu_custom_call.1} parent=1 // pred_fallthru
      _
    // Predicated region
    $region14: #{tpu_custom_call.1} parent=1 // pred_check
      _
    $region15: #{tpu_custom_call.1} parent=1 // pred_check_branch
      %42 = sbr.rel (0) target = $region17
    $region16: #{tpu_custom_call.1} parent=1 // pred_region
      %44 = vsyncadd [#allocation7], 0
      %s45 = sshll.u32 %s3, 4
      %s46 = int_to_ptr.hbm [resolvable:$true] %s45
      %s47 = sshll.u32 [#allocation8], 4
      %s48 = int_to_ptr.vmem [resolvable:$true] %s47
      %53 = dma.hbm_to_vmem [thread:$0]  %s46, 1024, %s48, [#allocation7], 128, 128, 8
    $region17: #{tpu_custom_call.1} parent=1 // pred_fallthru
      _
    // Predicated region
    $region18: #{tpu_custom_call.1} parent=1 // pred_check
      _
    $region19: #{tpu_custom_call.1} parent=1 // pred_check_branch
      %55 = sbr.rel (0) target = $region21
    $region20: #{tpu_custom_call.1} parent=1 // pred_region
      _
    $region21: #{tpu_custom_call.1} parent=1 // pred_fallthru
      _
    // Predicated region
    $region22: #{tpu_custom_call.1} parent=1 // pred_check
      _
    $region23: #{tpu_custom_call.1} parent=1 // pred_check_branch
      %57 = sbr.rel (0) target = $region25
    $region24: #{tpu_custom_call.1} parent=1 // pred_region
      %59 = dma.done [#allocation4], 256
    $region25: #{tpu_custom_call.1} parent=1 // pred_fallthru
      _
    // Predicated region
    $region26: #{tpu_custom_call.1} parent=1 // pred_check
      _
    $region27: #{tpu_custom_call.1} parent=1 // pred_check_branch
      %61 = sbr.rel (0) target = $region29
    $region28: #{tpu_custom_call.1} parent=1 // pred_region
      %63 = dma.done [#allocation7], 512
    $region29: #{tpu_custom_call.1} parent=1 // pred_fallthru
      _
    // Predicated region
    $region30: #{tpu_custom_call.1} parent=1 // pred_check
      _
    $region31: #{tpu_custom_call.1} parent=1 // pred_check_branch
      %65 = sbr.rel (0) target = $region33
    $region32: #{tpu_custom_call.1} parent=1 // pred_region
      %67 = dma.done [#allocation7], 1024
    $region33: #{tpu_custom_call.1} parent=1 // pred_fallthru
      _
    %p68 = scmp.eq.s32.totalorder 0, 0
    // Predicated region
    $region34: #{tpu_custom_call.1} parent=1 // pred_check
      %p69 = pneg %p68
    $region35: #{tpu_custom_call.1} parent=1 // pred_check_branch
      %71 = sbr.rel (%p69) target = $region37
    $region36: #{tpu_custom_call.1} parent=1 // pred_region
      %v72 = vld [vmem:[#allocation3] sm:$0xff]
      %v73 = vld [vmem:[#allocation3 + $0x8] sm:$0xff]
      %v74 = vld [vmem:[#allocation6] sm:$0xff]
      %v75 = vld [vmem:[#allocation6 + $0x8] sm:$0xff]
      %v76 = vld [vmem:[#allocation6 + $0x10] sm:$0xff]
      %v77 = vld [vmem:[#allocation6 + $0x18] sm:$0xff]
      %v78 = vld [vmem:[%s2] sm:$0x1]
      %v80 = vperm.slane %v78, 0
      %vm82 = vcmask 261120
      %v84 = vsel %vm82, %v72, 0
      %v87 = vsel %vm82, %v73, 0
      %89 = vmatpush.msra.mxu0 0.0
      %90 = vmatpush.msra.mxu0 0.0
      %91 = vmatpush.msra.mxu0 0.0
      %92 = vmatpush.msra.mxu0 0.0
      %93 = vmatpush.msra.mxu0 0.0
      %94 = vmatpush.msra.mxu0 0.0
      %95 = vmatpush.msra.mxu0 0.0
      %96 = vmatpush.msra.mxu0 0.0
      %97 = vmatpush.msra.mxu0 0.0
      %98 = vmatpush.msra.mxu0 0.0
      %99 = vmatpush.msra.mxu0 0.0
      %100 = vmatpush.msra.mxu0 0.0
      %101 = vmatpush.msra.mxu0 %v77
      %102 = vmatpush.msra.mxu0 %v76
      %103 = vmatpush.msra.mxu0 %v75
      %104 = vmatpush.msra.mxu0 %v74
      %105 = vmatmul.f32.gmra.mxu0 %v84
      %v106 = vpop.f32.mrf.mxu0
      %v107 = vadd.f32 %v80, %v106
      %108 = vmatmul.f32.gmra.mxu0 %v87
      %v109 = vpop.f32.mrf.mxu0
      %v110 = vadd.f32 %v80, %v109
      %111 = vdwg.mxu0
      %v112 = vxor.u32 %v107, 2147483648
      %v113 = vxor.u32 %v110, 2147483648
      %v114 = vmul.f32 %v112, 1.442695
      %v115 = vpow.pop %v114
      %v116 = vmul.f32 %v113, 1.442695
      %v117 = vpow.pop %v116
      %v118 = vadd.f32 %v115, 1.0
      %v119 = vadd.f32 %v117, 1.0
      %v120 = vrcp.pop %v118
      %v121 = vmul.f32 %v118, %v120
      %v122 = vsub.f32 1.0, %v121
      %v123 = vmul.f32 %v120, %v122
      %v124 = vadd.f32 %v120, %v123
      %vm125 = vweird.f32 %v118
      %vm126 = vweird.f32 %v120
      %vm127 = vmor %vm125, %vm126
      %v128 = vsel %vm127, %v120, %v124
      %v129 = vand.u32 2147483647, %v118
      %vm130 = vcmp.eq.f32.partialorder %v129, 8.507059e+37
      %v131 = vand.u32 %v118, 2147483648
      %v132 = vor.u32 1.1754944e-38, %v131
      %v133 = vsel %vm130, %v132, %v128
      %v134 = vmul.f32 1.0, %v133
      %v135 = vrcp.pop %v119
      %v136 = vmul.f32 %v119, %v135
      %v137 = vsub.f32 1.0, %v136
      %v138 = vmul.f32 %v135, %v137
      %v139 = vadd.f32 %v135, %v138
      %vm140 = vweird.f32 %v119
      %vm141 = vweird.f32 %v135
      %vm142 = vmor %vm140, %vm141
      %v143 = vsel %vm142, %v135, %v139
      %v144 = vand.u32 2147483647, %v119
      %vm145 = vcmp.eq.f32.partialorder %v144, 8.507059e+37
      %v146 = vand.u32 %v119, 2147483648
      %v147 = vor.u32 1.1754944e-38, %v146
      %v148 = vsel %vm145, %v147, %v143
      %v149 = vmul.f32 1.0, %v148
      %v150 = vmul.f32 %v107, %v134
      %v151 = vmul.f32 %v110, %v149
      %vm152 = vcmask 523264
      %153 = vst.msk [vmem:[#allocation2] sm:$0xff] %vm152, %v150
      %154 = vst.msk [vmem:[#allocation2 + $0x8] sm:$0xff] %vm152, %v151
    $region37: #{tpu_custom_call.1} parent=1 // pred_fallthru
      _
    %v155 = vld [vmem:[#allocation2] sm:$0xff]
    %v156 = vld [vmem:[#allocation2 + $0x8] sm:$0xff]
    %v157 = vld [vmem:[#allocation8] sm:$0xff]
    %v158 = vld [vmem:[#allocation8 + $0x8] sm:$0xff]
    %v159 = vld [vmem:[#allocation8 + $0x10] sm:$0xff]
    %v160 = vld [vmem:[#allocation8 + $0x18] sm:$0xff]
    %v161 = vld [vmem:[#allocation8 + $0x20] sm:$0xff]
    %v162 = vld [vmem:[#allocation8 + $0x28] sm:$0xff]
    %v163 = vld [vmem:[#allocation8 + $0x30] sm:$0xff]
    %v164 = vld [vmem:[#allocation8 + $0x38] sm:$0xff]
    %v165 = vld [vmem:[%s4] sm:$0x1]
    %v167 = vperm.slane %v165, 0
    %vm169 = vcmask 523264
    %v171 = vsel %vm169, %v155, 0
    %v174 = vsel %vm169, %v156, 0
    %176 = vmatpush.msra.mxu0 0.0
    %177 = vmatpush.msra.mxu0 0.0
    %178 = vmatpush.msra.mxu0 0.0
    %179 = vmatpush.msra.mxu0 0.0
    %180 = vmatpush.msra.mxu0 0.0
    %181 = vmatpush.msra.mxu0 0.0
    %182 = vmatpush.msra.mxu0 0.0
    %183 = vmatpush.msra.mxu0 0.0
    %184 = vmatpush.msra.mxu0 %v164
    %185 = vmatpush.msra.mxu0 %v163
    %186 = vmatpush.msra.mxu0 %v162
    %187 = vmatpush.msra.mxu0 %v161
    %188 = vmatpush.msra.mxu0 %v160
    %189 = vmatpush.msra.mxu0 %v159
    %190 = vmatpush.msra.mxu0 %v158
    %191 = vmatpush.msra.mxu0 %v157
    %192 = vmatmul.f32.gmra.mxu0 %v171
    %v193 = vpop.f32.mrf.mxu0
    %v194 = vadd.f32 %v167, %v193
    %195 = vmatmul.f32.gmra.mxu0 %v174
    %v196 = vpop.f32.mrf.mxu0
    %v197 = vadd.f32 %v167, %v196
    %198 = vdwg.mxu0
    %199 = vst.msk [vmem:[#allocation9] sm:$0xff] %vm169, %v194
    %200 = vst.msk [vmem:[#allocation9 + $0x8] sm:$0xff] %vm169, %v197
    // Predicated region
    $region38: #{tpu_custom_call.1} parent=1 // pred_check
      _
    $region39: #{tpu_custom_call.1} parent=1 // pred_check_branch
      %202 = sbr.rel (0) target = $region41
    $region40: #{tpu_custom_call.1} parent=1 // pred_region
      %204 = vsyncadd [#allocation5], 0
      %s205 = sshll.u32 [#allocation9], 4
      %s206 = int_to_ptr.vmem [resolvable:$true] %s205
      %s207 = sshll.u32 %s5, 4
      %s208 = int_to_ptr.hbm [resolvable:$true] %s207
      %213 = dma.vmem_to_hbm [thread:$0]  %s206, 256, %s208, [#allocation5], 128, 128, 8
    $region41: #{tpu_custom_call.1} parent=1 // pred_fallthru
      _
    // Predicated region
    $region42: #{tpu_custom_call.1} parent=1 // pred_check
      _
    $region43: #{tpu_custom_call.1} parent=1 // pred_check_branch
      %215 = sbr.rel (0) target = $region45
    $region44: #{tpu_custom_call.1} parent=1 // pred_region
      %217 = dma.done [#allocation5], 256
    $region45: #{tpu_custom_call.1} parent=1 // pred_fallthru
      _
    %218 = vsyncpa [#allocation4], 1
    %219 = vsyncpa [#allocation7], 1
    %220 = vsyncpa [#allocation5], 1

// kernel: tpu_custom_call.1
$region0: #{tpu_custom_call.1}
  #allocation0 [shape = 'u32[]', space=smem, size = 0x4, offset = 0x4, fixed_abs, tag = 'smem constant byte address 0x4 - core index']
  #allocation1 [shape = 'u32[72,128]{1,0:T(1,128)}', space=vmem, size = 0x9000, scoped, tag = 'internal scratch']
  #allocation2 [shape = 'f32[16,64]{1,0:T(8,128)}', space=vmem, size = 0x2000, scoped, tag = 'scratch operand']
  %s0 = inlined_call_operand.hbm [shape: f32[16,32], index: 0, kind: input, shape index: {}]
  %s1 = inlined_call_operand.hbm [shape: f32[32,64], index: 1, kind: input, shape index: {}]
  %s2 = inlined_call_operand.vmem [shape: f32[1,64], index: 2, kind: input, shape index: {}]
  %s3 = inlined_call_operand.hbm [shape: f32[64,64], index: 3, kind: input, shape index: {}]
  %s4 = inlined_call_operand.vmem [shape: f32[1,64], index: 4, kind: input, shape index: {}]
  %s5 = inlined_call_operand.hbm [shape: f32[16,64], index: 5, kind: output, shape index: {}]
  %s6 = sld [smem:[#allocation0]]
  $region46: #{tpu_custom_call.1} parent=0
    _
  %s8 = ssub.s32 1, %s6
  %s9 = scalar_select 0, %s8, %s6
  $region1: #{tpu_custom_call.1} parent=0
    #allocation3 [shape = 'u8[8192]{0}', space=vmem, size = 0x2000, scoped, tag = 'input window, operand 0, single buffered']
    #allocation4 [shape = 's32[1]{0}', space=sflag, size = 0x4, scoped, tag = 'scoped memory for tpu_custom_call.1']
    #allocation5 [shape = 's32[1]{0}', space=sflag, size = 0x4, scoped, tag = 'scoped memory for tpu_custom_call.1']
    #allocation6 [shape = 'u8[16384]{0}', space=vmem, size = 0x4000, scoped, tag = 'input window, operand 1, single buffered']
    #allocation7 [shape = 's32[1]{0}', space=sflag, size = 0x4, scoped, tag = 'scoped memory for tpu_custom_call.1']
    #allocation8 [shape = 'u8[32768]{0}', space=vmem, size = 0x8000, scoped, tag = 'input window, operand 3, single buffered']
    #allocation9 [shape = 'u8[8192]{0}', space=vmem, size = 0x2000, scoped, tag = 'output window, operand 0, single buffered']
    %10 = vsyncpa [#allocation4], 0
    %11 = vsyncpa [#allocation7], 0
    %12 = vsyncpa [#allocation5], 0
    // Predicated region
    $region2: #{tpu_custom_call.1} parent=1 // pred_check
      _
    $region3: #{tpu_custom_call.1} parent=1 // pred_check_branch
      %14 = sbr.rel (0) target = $region5
    $region4: #{tpu_custom_call.1} parent=1 // pred_region
      %16 = vsyncadd [#allocation4], 0
      %s17 = sshll.u32 %s0, 4
      %s18 = int_to_ptr.hbm [resolvable:$true] %s17
      %s19 = sshll.u32 [#allocation3], 4
      %s20 = int_to_ptr.vmem [resolvable:$true] %s19
      %25 = dma.hbm_to_vmem [thread:$0]  %s18, 256, %s20, [#allocation4], 128, 128, 8
    $region5: #{tpu_custom_call.1} parent=1 // pred_fallthru
      _
    // Predicated region
    $region6: #{tpu_custom_call.1} parent=1 // pred_check
      _
    $region7: #{tpu_custom_call.1} parent=1 // pred_check_branch
      %27 = sbr.rel (0) target = $region9
    $region8: #{tpu_custom_call.1} parent=1 // pred_region
      %29 = vsyncadd [#allocation7], 0
      %s30 = sshll.u32 %s1, 4
      %s31 = int_to_ptr.hbm [resolvable:$true] %s30
      %s32 = sshll.u32 [#allocation6], 4
      %s33 = int_to_ptr.vmem [resolvable:$true] %s32
      %38 = dma.hbm_to_vmem [thread:$0]  %s31, 512, %s33, [#allocation7], 128, 128, 8
    $region9: #{tpu_custom_call.1} parent=1 // pred_fallthru
      _
    // Predicated region
    $region10: #{tpu_custom_call.1} parent=1 // pred_check
      _
    $region11: #{tpu_custom_call.1} parent=1 // pred_check_branch
      %40 = sbr.rel (0) target = $region13
    $region12: #{tpu_custom_call.1} parent=1 // pred_region
      _
    $region13: #{tpu_custom_call.1} parent=1 // pred_fallthru
      _
    // Predicated region
    $region14: #{tpu_custom_call.1} parent=1 // pred_check
      _
    $region15: #{tpu_custom_call.1} parent=1 // pred_check_branch
      %42 = sbr.rel (0) target = $region17
    $region16: #{tpu_custom_call.1} parent=1 // pred_region
      %44 = vsyncadd [#allocation7], 0
      %s45 = sshll.u32 %s3, 4
      %s46 = int_to_ptr.hbm [resolvable:$true] %s45
      %s47 = sshll.u32 [#allocation8], 4
      %s48 = int_to_ptr.vmem [resolvable:$true] %s47
      %53 = dma.hbm_to_vmem [thread:$0]  %s46, 1024, %s48, [#allocation7], 128, 128, 8
    $region17: #{tpu_custom_call.1} parent=1 // pred_fallthru
      _
    // Predicated region
    $region18: #{tpu_custom_call.1} parent=1 // pred_check
      _
    $region19: #{tpu_custom_call.1} parent=1 // pred_check_branch
      %55 = sbr.rel (0) target = $region21
    $region20: #{tpu_custom_call.1} parent=1 // pred_region
      _
    $region21: #{tpu_custom_call.1} parent=1 // pred_fallthru
      _
    // Predicated region
    $region22: #{tpu_custom_call.1} parent=1 // pred_check
      _
    $region23: #{tpu_custom_call.1} parent=1 // pred_check_branch
      %57 = sbr.rel (0) target = $region25
    $region24: #{tpu_custom_call.1} parent=1 // pred_region
      %59 = dma.done [#allocation4], 256
    $region25: #{tpu_custom_call.1} parent=1 // pred_fallthru
      _
    // Predicated region
    $region26: #{tpu_custom_call.1} parent=1 // pred_check
      _
    $region27: #{tpu_custom_call.1} parent=1 // pred_check_branch
      %61 = sbr.rel (0) target = $region29
    $region28: #{tpu_custom_call.1} parent=1 // pred_region
      %63 = dma.done [#allocation7], 512
    $region29: #{tpu_custom_call.1} parent=1 // pred_fallthru
      _
    // Predicated region
    $region30: #{tpu_custom_call.1} parent=1 // pred_check
      _
    $region31: #{tpu_custom_call.1} parent=1 // pred_check_branch
      %65 = sbr.rel (0) target = $region33
    $region32: #{tpu_custom_call.1} parent=1 // pred_region
      %67 = dma.done [#allocation7], 1024
    $region33: #{tpu_custom_call.1} parent=1 // pred_fallthru
      _
    %p68 = scmp.eq.s32.totalorder 0, 0
    // Predicated region
    $region34: #{tpu_custom_call.1} parent=1 // pred_check
      %p69 = pneg %p68
    $region35: #{tpu_custom_call.1} parent=1 // pred_check_branch
      %71 = sbr.rel (%p69) target = $region37
    $region36: #{tpu_custom_call.1} parent=1 // pred_region
      %v72 = vld [vmem:[#allocation3] sm:$0xff]
      %v73 = vld [vmem:[#allocation3 + $0x8] sm:$0xff]
      %v74 = vld [vmem:[#allocation6] sm:$0xff]
      %v75 = vld [vmem:[#allocation6 + $0x8] sm:$0xff]
      %v76 = vld [vmem:[#allocation6 + $0x10] sm:$0xff]
      %v77 = vld [vmem:[#allocation6 + $0x18] sm:$0xff]
      %v78 = vld [vmem:[%s2] sm:$0x1]
      %v80 = vperm.slane %v78, 0
      %vm82 = vcmask 261120
      %v84 = vsel %vm82, %v72, 0
      %v87 = vsel %vm82, %v73, 0
      %89 = vmatpush.msra.mxu0 0.0
      %90 = vmatpush.msra.mxu0 0.0
      %91 = vmatpush.msra.mxu0 0.0
      %92 = vmatpush.msra.mxu0 0.0
      %93 = vmatpush.msra.mxu0 0.0
      %94 = vmatpush.msra.mxu0 0.0
      %95 = vmatpush.msra.mxu0 0.0
      %96 = vmatpush.msra.mxu0 0.0
      %97 = vmatpush.msra.mxu0 0.0
      %98 = vmatpush.msra.mxu0 0.0
      %99 = vmatpush.msra.mxu0 0.0
      %100 = vmatpush.msra.mxu0 0.0
      %101 = vmatpush.msra.mxu0 %v77
      %102 = vmatpush.msra.mxu0 %v76
      %103 = vmatpush.msra.mxu0 %v75
      %104 = vmatpush.msra.mxu0 %v74
      %105 = vmatmul.f32.gmra.mxu0 %v84
      %v106 = vpop.f32.mrf.mxu0
      %v107 = vadd.f32 %v80, %v106
      %108 = vmatmul.f32.gmra.mxu0 %v87
      %v109 = vpop.f32.mrf.mxu0
      %v110 = vadd.f32 %v80, %v109
      %111 = vdwg.mxu0
      %v112 = vxor.u32 %v107, 2147483648
      %v113 = vxor.u32 %v110, 2147483648
      %v114 = vmul.f32 %v112, 1.442695
      %v115 = vpow.pop %v114
      %v116 = vmul.f32 %v113, 1.442695
      %v117 = vpow.pop %v116
      %v118 = vadd.f32 %v115, 1.0
      %v119 = vadd.f32 %v117, 1.0
      %v120 = vrcp.pop %v118
      %v121 = vmul.f32 %v118, %v120
      %v122 = vsub.f32 1.0, %v121
      %v123 = vmul.f32 %v120, %v122
      %v124 = vadd.f32 %v120, %v123
      %vm125 = vweird.f32 %v118
      %vm126 = vweird.f32 %v120
      %vm127 = vmor %vm125, %vm126
      %v128 = vsel %vm127, %v120, %v124
      %v129 = vand.u32 2147483647, %v118
      %vm130 = vcmp.eq.f32.partialorder %v129, 8.507059e+37
      %v131 = vand.u32 %v118, 2147483648
      %v132 = vor.u32 1.1754944e-38, %v131
      %v133 = vsel %vm130, %v132, %v128
      %v134 = vmul.f32 1.0, %v133
      %v135 = vrcp.pop %v119
      %v136 = vmul.f32 %v119, %v135
      %v137 = vsub.f32 1.0, %v136
      %v138 = vmul.f32 %v135, %v137
      %v139 = vadd.f32 %v135, %v138
      %vm140 = vweird.f32 %v119
      %vm141 = vweird.f32 %v135
      %vm142 = vmor %vm140, %vm141
      %v143 = vsel %vm142, %v135, %v139
      %v144 = vand.u32 2147483647, %v119
      %vm145 = vcmp.eq.f32.partialorder %v144, 8.507059e+37
      %v146 = vand.u32 %v119, 2147483648
      %v147 = vor.u32 1.1754944e-38, %v146
      %v148 = vsel %vm145, %v147, %v143
      %v149 = vmul.f32 1.0, %v148
      %v150 = vmul.f32 %v107, %v134
      %v151 = vmul.f32 %v110, %v149
      %vm152 = vcmask 523264
      %153 = vst.msk [vmem:[#allocation2] sm:$0xff] %vm152, %v150
      %154 = vst.msk [vmem:[#allocation2 + $0x8] sm:$0xff] %vm152, %v151
    $region37: #{tpu_custom_call.1} parent=1 // pred_fallthru
      _
    %v155 = vld [vmem:[#allocation2] sm:$0xff]
    %v156 = vld [vmem:[#allocation2 + $0x8] sm:$0xff]
    %v157 = vld [vmem:[#allocation8] sm:$0xff]
    %v158 = vld [vmem:[#allocation8 + $0x8] sm:$0xff]
    %v159 = vld [vmem:[#allocation8 + $0x10] sm:$0xff]
    %v160 = vld [vmem:[#allocation8 + $0x18] sm:$0xff]
    %v161 = vld [vmem:[#allocation8 + $0x20] sm:$0xff]
    %v162 = vld [vmem:[#allocation8 + $0x28] sm:$0xff]
    %v163 = vld [vmem:[#allocation8 + $0x30] sm:$0xff]
    %v164 = vld [vmem:[#allocation8 + $0x38] sm:$0xff]
    %v165 = vld [vmem:[%s4] sm:$0x1]
    %v167 = vperm.slane %v165, 0
    %vm169 = vcmask 523264
    %v171 = vsel %vm169, %v155, 0
    %v174 = vsel %vm169, %v156, 0
    %176 = vmatpush.msra.mxu0 0.0
    %177 = vmatpush.msra.mxu0 0.0
    %178 = vmatpush.msra.mxu0 0.0
    %179 = vmatpush.msra.mxu0 0.0
    %180 = vmatpush.msra.mxu0 0.0
    %181 = vmatpush.msra.mxu0 0.0
    %182 = vmatpush.msra.mxu0 0.0
    %183 = vmatpush.msra.mxu0 0.0
    %184 = vmatpush.msra.mxu0 %v164
    %185 = vmatpush.msra.mxu0 %v163
    %186 = vmatpush.msra.mxu0 %v162
    %187 = vmatpush.msra.mxu0 %v161
    %188 = vmatpush.msra.mxu0 %v160
    %189 = vmatpush.msra.mxu0 %v159
    %190 = vmatpush.msra.mxu0 %v158
    %191 = vmatpush.msra.mxu0 %v157
    %192 = vmatmul.f32.gmra.mxu0 %v171
    %v193 = vpop.f32.mrf.mxu0
    %v194 = vadd.f32 %v167, %v193
    %195 = vmatmul.f32.gmra.mxu0 %v174
    %v196 = vpop.f32.mrf.mxu0
    %v197 = vadd.f32 %v167, %v196
    %198 = vdwg.mxu0
    %199 = vst.msk [vmem:[#allocation9] sm:$0xff] %vm169, %v194
    %200 = vst.msk [vmem:[#allocation9 + $0x8] sm:$0xff] %vm169, %v197
    // Predicated region
    $region38: #{tpu_custom_call.1} parent=1 // pred_check
      _
    $region39: #{tpu_custom_call.1} parent=1 // pred_check_branch
      %202 = sbr.rel (0) target = $region41
    $region40: #{tpu_custom_call.1} parent=1 // pred_region
      %204 = vsyncadd [#allocation5], 0
      %s205 = sshll.u32 [#allocation9], 4
      %s206 = int_to_ptr.vmem [resolvable:$true] %s205
      %s207 = sshll.u32 %s5, 4
      %s208 = int_to_ptr.hbm [resolvable:$true] %s207
      %213 = dma.vmem_to_hbm [thread:$0]  %s206, 256, %s208, [#allocation5], 128, 128, 8
    $region41: #{tpu_custom_call.1} parent=1 // pred_fallthru
      _
    // Predicated region
    $region42: #{tpu_custom_call.1} parent=1 // pred_check
      _
    $region43: #{tpu_custom_call.1} parent=1 // pred_check_branch
      %215 = sbr.rel (0) target = $region45
    $region44: #{tpu_custom_call.1} parent=1 // pred_region
      %217 = dma.done [#allocation5], 256
    $region45: #{tpu_custom_call.1} parent=1 // pred_fallthru
      _
    %218 = vsyncpa [#allocation4], 1
    %219 = vsyncpa [#allocation7], 1
    %220 = vsyncpa [#allocation5], 1

</llo_original>
